<compile_context>
chip_gen: v7x
topology: tpu7x:2x2x1
jax: 0.10.0
libtpu: 0.0.40
codegen_flags: <defaults>
</compile_context>

<pallas_src>
import functools

import jax
import jax.numpy as jnp
from jax.experimental import pallas as pl
from jax.experimental.pallas import tpu as pltpu

_LANE = 128
_SUB = 8
_MAX_BLOCK_ELEMS = 1 << 20          # 4 MiB f32 per input block
_VMEM_LIMIT = 32 << 20              # explicit scoped-VMEM budget (all gens)


def _round_up(x, m):
    return (x + m - 1) // m * m


def _pick_col_tile(cols):
    """Column tile: whole (128-padded) width if it fits, else an exact divisor."""
    max_lanes = _MAX_BLOCK_ELEMS // (_SUB * _LANE)          # 1024 lane-groups
    if cols <= max_lanes * _LANE:
        return _round_up(cols, _LANE)                        # single column tile
    for nd in range(max_lanes, 0, -1):                       # exact divisor: no pad
        if cols % (nd * _LANE) == 0:
            return nd * _LANE
    best = None
    for nd in range(max_lanes, 0, -1):                       # widest tile, tiny pad
        tc = nd * _LANE
        pad = _round_up(cols, tc) - cols
        if pad * 50 <= cols:                                  # <= 2% padding
            return tc
        if best is None or pad < best[0]:
            best = (pad, tc)
    return best[1]


def _pick_row_tile(rows_p, tc):
    """Largest multiple-of-8 divisor of rows_p that fits; prefer >=2 row steps."""
    fit = max(_SUB, (_MAX_BLOCK_ELEMS // tc) // _SUB * _SUB)
    divs = [d for d in range(_SUB, rows_p + 1, _SUB) if rows_p % d == 0]
    proper = [d for d in divs if d <= rows_p // 2]            # >=2 parallel steps
    for cand in (proper, divs):
        ok = [d for d in cand if d <= fit]
        if ok:
            return max(ok)
    return _SUB


def _bce_dice_kernel(pred_ref, target_ref, mask_ref,
                     tp_ref, den_ref, bce_ref=None, *, compute_bce):
    """Fused masked-BCE + dice partial sums, accumulated over the column axis."""
    k = pl.program_id(2)  # column (reduction) axis — last grid dim

    @pl.when(k == 0)
    def _init():
        tp_ref[...] = jnp.zeros_like(tp_ref)
        den_ref[...] = jnp.zeros_like(den_ref)
        if compute_bce:
            bce_ref[...] = jnp.zeros_like(bce_ref)

    m = mask_ref[...].astype(jnp.float32)
    p = pred_ref[...].astype(jnp.float32) * m
    t = target_ref[...].astype(jnp.float32) * m

    # SoftDiceLoss per (B,C) row:  2*tp + fp + fn == sum(p) + sum(t).
    tp_ref[...] += jnp.sum(p * t, axis=1, keepdims=True)
    den_ref[...] += jnp.sum(p + t, axis=1, keepdims=True)

    if compute_bce:
        # nn.BCELoss element-wise term with PyTorch's -100 log clamp; the
        # global mean is taken in the wrapper. Zero-padded entries contribute 0.
        log_p = jnp.maximum(jnp.log(p), -100.0)
        log_1mp = jnp.maximum(jnp.log(1.0 - p), -100.0)
        bce = -(t * (log_p - log_1mp) + log_1mp)
        bce_ref[...] += jnp.sum(bce, axis=1, keepdims=True)


@functools.partial(jax.jit,
                   static_argnames=("dice_weight", "bce_weight", "smooth"))
def combined_bce_dice_loss(pred, target, mask,
                           dice_weight=1.0, bce_weight=0.0, *, smooth=0.0):
    assert pred.shape == target.shape == mask.shape and pred.ndim == 4
    b, c, h, w = pred.shape
    rows, cols = b * c, h * w
    n_elems = rows * cols
    compute_bce = bool(bce_weight != 0.0)

    # ---- static tiling -------------------------------------------------
    rows_p = _round_up(rows, _SUB)
    tc = _pick_col_tile(cols)
    cols_p = _round_up(cols, tc)
    tr = _pick_row_tile(rows_p, tc)

    row_steps = rows_p // tr
    col_steps = cols_p // tc
    # v7x megacore: with a single row step, split the column reduction into
    # two independently accumulated halves (summed in the wrapper below).
    n_splits = 2 if (row_steps == 1 and col_steps >= 2
                     and col_steps % 2 == 0) else 1
    inner = col_steps // n_splits

    def _prep(x):
        x2 = x.reshape(rows, cols)
        if rows_p != rows or cols_p != cols:
            # zero padding contributes exactly 0 to every partial sum
            x2 = jnp.pad(x2, ((0, rows_p - rows), (0, cols_p - cols)))
        return x2

    pred2, target2, mask2 = _prep(pred), _prep(target), _prep(mask)

    in_spec = pl.BlockSpec((tr, tc), lambda i, s, k: (i, s * inner + k))
    out_spec = pl.BlockSpec((None, tr, 1), lambda i, s, k: (s, i, 0))
    out_sds = jax.ShapeDtypeStruct((n_splits, rows_p, 1), jnp.float32)
    n_out = 3 if compute_bce else 2

    cost = pl.CostEstimate(
        flops=(14 if compute_bce else 6) * n_elems,
        transcendentals=(2 * n_elems) if compute_bce else 0,
        bytes_accessed=3 * rows_p * cols_p * 4 + n_out * n_splits * rows_p * 4)

    outs = pl.pallas_call(
        functools.partial(_bce_dice_kernel, compute_bce=compute_bce),
        out_shape=(out_sds,) * n_out,
        grid=(row_steps, n_splits, inner),
        in_specs=[in_spec, in_spec, in_spec],
        out_specs=(out_spec,) * n_out,
        compiler_params=pltpu.CompilerParams(
            dimension_semantics=("parallel", "parallel", "arbitrary"),
            vmem_limit_bytes=_VMEM_LIMIT),
        cost_estimate=cost,
    )(pred2, target2, mask2)

    tp = jnp.sum(outs[0][:, :rows, 0], axis=0)
    den = jnp.sum(outs[1][:, :rows, 0], axis=0)

    # dc = (2*tp + s) / (2*tp + fp + fn + s) with 2*tp+fp+fn == sum(p)+sum(t)
    dc = (2.0 * tp + smooth) / (den + smooth)
    dice = 1.0 - jnp.mean(dc)
    loss = dice_weight * dice
    if compute_bce:
        bce = jnp.sum(outs[2]) / jnp.float32(n_elems)   # padded entries are 0
        loss = loss + bce_weight * bce
    return loss


def _reference(pred, target, mask, dice_w, bce_w, smooth=0.0):
    """Pure-JAX mirror of the PyTorch module for correctness checking."""
    p = pred * mask
    t = target * mask
    bce = jnp.mean(-(t * jnp.maximum(jnp.log(p), -100.0)
                     + (1.0 - t) * jnp.maximum(jnp.log(1.0 - p), -100.0)))
    tp = jnp.sum(p * t, axis=(-2, -1))
    fp = jnp.sum(p * (1.0 - t), axis=(-2, -1))
    fn = jnp.sum((1.0 - p) * t, axis=(-2, -1))
    dc = (2.0 * tp + smooth) / (2.0 * tp + fp + fn + smooth)
    return bce_w * bce + dice_w * (1.0 - jnp.mean(dc))


if __name__ == "__main__":
    key = jax.random.PRNGKey(0)
    k1, k2, k3 = jax.random.split(key, 3)

    # NCHW inputs (B=2, C=4, H=W=16); BCELoss needs pred in [0, 1].
    shape = (2, 4, 16, 16)
    pred = jax.random.uniform(k1, shape, jnp.float32, minval=0.02, maxval=0.98)
    target = (jax.random.uniform(k2, shape, jnp.float32) > 0.6).astype(jnp.float32)
    mask = (jax.random.uniform(k3, shape, jnp.float32) > 0.2).astype(jnp.float32)

    # Module defaults: dice_weight=1.0, bce_weight=0.0, SoftDiceLoss(smooth=0.0).
    out = combined_bce_dice_loss(pred, target, mask, 1.0, 0.0)
    jax.block_until_ready(out)
    ref = _reference(pred, target, mask, 1.0, 0.0)
    assert out.shape == ()
    assert bool(jnp.isfinite(out))
    assert bool(jnp.allclose(out, ref, rtol=1e-5, atol=1e-5)), (out, ref)

    # Also exercise the BCE branch with non-default weights.
    out2 = combined_bce_dice_loss(pred, target, mask, 0.7, 0.3)
    jax.block_until_ready(out2)
    ref2 = _reference(pred, target, mask, 0.7, 0.3)
    assert bool(jnp.allclose(out2, ref2, rtol=1e-5, atol=1e-5)), (out2, ref2)

    print("KERNEL_OK")
</pallas_src>

<mosaic_0001>
module attributes {stable_mosaic.version = 11 : i64} {
  func.func @_bce_dice_kernel(%arg0: i32, %arg1: i32, %arg2: i32, %arg3: memref<8x256xf32, #tpu.memory_space<vmem>>, %arg4: memref<8x256xf32, #tpu.memory_space<vmem>>, %arg5: memref<8x256xf32, #tpu.memory_space<vmem>>, %arg6: memref<1x8x1xf32, #tpu.memory_space<vmem>>, %arg7: memref<1x8x1xf32, #tpu.memory_space<vmem>>) attributes {dimension_semantics = [#tpu.dimension_semantics<parallel>, #tpu.dimension_semantics<parallel>, #tpu.dimension_semantics<arbitrary>], iteration_bounds = array<i64: 1, 1, 1>, scalar_prefetch = 0 : i64, scratch_operands = 0 : i64, tpu.core_type = #tpu.core_type<tc>, window_params = [{transform_indices = @transform_0, window_bounds = array<i64: 8, 256>}, {transform_indices = @transform_1, window_bounds = array<i64: 8, 256>}, {transform_indices = @transform_2, window_bounds = array<i64: 8, 256>}, {transform_indices = @transform_3, window_bounds = array<i64: 1, 8, 1>}, {transform_indices = @transform_4, window_bounds = array<i64: 1, 8, 1>}]} {
    %c0_i32 = arith.constant 0 : i32
    %0 = arith.cmpi eq, %arg2, %c0_i32 : i32
    %1 = arith.extui %0 : i1 to i32
    %c0_i32_0 = arith.constant 0 : i32
    %2 = arith.cmpi ne, %1, %c0_i32_0 : i32
    scf.if %2 {
      %cst_19 = arith.constant 0.000000e+00 : f32
      %26 = vector.broadcast %cst_19 : f32 to vector<8x1xf32>
      %c0_20 = arith.constant 0 : index
      %c0_21 = arith.constant 0 : index
      %c0_22 = arith.constant 0 : index
      %27 = vector.load %arg6[%c0_20, %c0_21, %c0_22] : memref<1x8x1xf32, #tpu.memory_space<vmem>>, vector<1x8x1xf32>
      %28 = vector.shape_cast %27 : vector<1x8x1xf32> to vector<8x1xf32>
      %29 = vector.shape_cast %26 : vector<8x1xf32> to vector<1x8x1xf32>
      tpu.vector_store %arg6[%c0_20, %c0_21, %c0_22], %29 {strides = array<i32>} : memref<1x8x1xf32, #tpu.memory_space<vmem>>, vector<1x8x1xf32>,
      %cst_23 = arith.constant 0.000000e+00 : f32
      %30 = vector.broadcast %cst_23 : f32 to vector<8x1xf32>
      %c0_24 = arith.constant 0 : index
      %c0_25 = arith.constant 0 : index
      %c0_26 = arith.constant 0 : index
      %31 = vector.load %arg7[%c0_24, %c0_25, %c0_26] : memref<1x8x1xf32, #tpu.memory_space<vmem>>, vector<1x8x1xf32>
      %32 = vector.shape_cast %31 : vector<1x8x1xf32> to vector<8x1xf32>
      %33 = vector.shape_cast %30 : vector<8x1xf32> to vector<1x8x1xf32>
      tpu.vector_store %arg7[%c0_24, %c0_25, %c0_26], %33 {strides = array<i32>} : memref<1x8x1xf32, #tpu.memory_space<vmem>>, vector<1x8x1xf32>,
    } else {
    }
    %c0 = arith.constant 0 : index
    %c0_1 = arith.constant 0 : index
    %3 = vector.load %arg5[%c0, %c0_1] : memref<8x256xf32, #tpu.memory_space<vmem>>, vector<8x256xf32>
    %c0_2 = arith.constant 0 : index
    %c0_3 = arith.constant 0 : index
    %4 = vector.load %arg3[%c0_2, %c0_3] : memref<8x256xf32, #tpu.memory_space<vmem>>, vector<8x256xf32>
    %5 = arith.mulf %4, %3 : vector<8x256xf32>
    %c0_4 = arith.constant 0 : index
    %c0_5 = arith.constant 0 : index
    %6 = vector.load %arg4[%c0_4, %c0_5] : memref<8x256xf32, #tpu.memory_space<vmem>>, vector<8x256xf32>
    %7 = arith.mulf %6, %3 : vector<8x256xf32>
    %c0_6 = arith.constant 0 : index
    %c0_7 = arith.constant 0 : index
    %c0_8 = arith.constant 0 : index
    %8 = vector.load %arg6[%c0_6, %c0_7, %c0_8] : memref<1x8x1xf32, #tpu.memory_space<vmem>>, vector<1x8x1xf32>
    %9 = vector.shape_cast %8 : vector<1x8x1xf32> to vector<8x1xf32>
    %10 = arith.mulf %5, %7 : vector<8x256xf32>
    %cst = arith.constant dense<0.000000e+00> : vector<8xf32>
    %11 = vector.multi_reduction <add>, %10, %cst [1] : vector<8x256xf32> to vector<8xf32>
    %12 = vector.shape_cast %11 : vector<8xf32> to vector<8x1xf32>
    %13 = arith.addf %9, %12 : vector<8x1xf32>
    %c0_9 = arith.constant 0 : index
    %c0_10 = arith.constant 0 : index
    %c0_11 = arith.constant 0 : index
    %14 = vector.load %arg6[%c0_9, %c0_10, %c0_11] : memref<1x8x1xf32, #tpu.memory_space<vmem>>, vector<1x8x1xf32>
    %15 = vector.shape_cast %14 : vector<1x8x1xf32> to vector<8x1xf32>
    %16 = vector.shape_cast %13 : vector<8x1xf32> to vector<1x8x1xf32>
    tpu.vector_store %arg6[%c0_9, %c0_10, %c0_11], %16 {strides = array<i32>} : memref<1x8x1xf32, #tpu.memory_space<vmem>>, vector<1x8x1xf32>,
    %c0_12 = arith.constant 0 : index
    %c0_13 = arith.constant 0 : index
    %c0_14 = arith.constant 0 : index
    %17 = vector.load %arg7[%c0_12, %c0_13, %c0_14] : memref<1x8x1xf32, #tpu.memory_space<vmem>>, vector<1x8x1xf32>
    %18 = vector.shape_cast %17 : vector<1x8x1xf32> to vector<8x1xf32>
    %19 = arith.addf %5, %7 : vector<8x256xf32>
    %cst_15 = arith.constant dense<0.000000e+00> : vector<8xf32>
    %20 = vector.multi_reduction <add>, %19, %cst_15 [1] : vector<8x256xf32> to vector<8xf32>
    %21 = vector.shape_cast %20 : vector<8xf32> to vector<8x1xf32>
    %22 = arith.addf %18, %21 : vector<8x1xf32>
    %c0_16 = arith.constant 0 : index
    %c0_17 = arith.constant 0 : index
    %c0_18 = arith.constant 0 : index
    %23 = vector.load %arg7[%c0_16, %c0_17, %c0_18] : memref<1x8x1xf32, #tpu.memory_space<vmem>>, vector<1x8x1xf32>
    %24 = vector.shape_cast %23 : vector<1x8x1xf32> to vector<8x1xf32>
    %25 = vector.shape_cast %22 : vector<8x1xf32> to vector<1x8x1xf32>
    tpu.vector_store %arg7[%c0_16, %c0_17, %c0_18], %25 {strides = array<i32>} : memref<1x8x1xf32, #tpu.memory_space<vmem>>, vector<1x8x1xf32>,
    return
  }
  func.func @transform_0(%arg0: i32, %arg1: i32, %arg2: i32) -> (i32, i32) {
    %c1_i32 = arith.constant 1 : i32
    %0 = arith.muli %arg1, %c1_i32 : i32
    %1 = arith.addi %0, %arg2 : i32
    %c0_i32 = arith.constant 0 : i32
    return %arg0, %1 : i32, i32
  }
  func.func @transform_1(%arg0: i32, %arg1: i32, %arg2: i32) -> (i32, i32) {
    %c1_i32 = arith.constant 1 : i32
    %0 = arith.muli %arg1, %c1_i32 : i32
    %1 = arith.addi %0, %arg2 : i32
    %c0_i32 = arith.constant 0 : i32
    return %arg0, %1 : i32, i32
  }
  func.func @transform_2(%arg0: i32, %arg1: i32, %arg2: i32) -> (i32, i32) {
    %c1_i32 = arith.constant 1 : i32
    %0 = arith.muli %arg1, %c1_i32 : i32
    %1 = arith.addi %0, %arg2 : i32
    %c0_i32 = arith.constant 0 : i32
    return %arg0, %1 : i32, i32
  }
  func.func @transform_3(%arg0: i32, %arg1: i32, %arg2: i32) -> (i32, i32, i32) {
    %c0_i32 = arith.constant 0 : i32
    %c0_i32_0 = arith.constant 0 : i32
    return %arg1, %arg0, %c0_i32 : i32, i32, i32
  }
  func.func @transform_4(%arg0: i32, %arg1: i32, %arg2: i32) -> (i32, i32, i32) {
    %c0_i32 = arith.constant 0 : i32
    %c0_i32_0 = arith.constant 0 : i32
    return %arg1, %arg0, %c0_i32 : i32, i32, i32
  }
}

</mosaic_0001>

<llo_original>
// kernel: combined_bce_dice_loss.1
$region0: #{combined_bce_dice_loss.1}
  #allocation0 [shape = 'u32[]', space=smem, size = 0x4, offset = 0x4, fixed_abs, tag = 'smem constant byte address 0x4 - core index']
  #allocation1 [shape = 'u32[144,128]{1,0:T(1,128)}', space=vmem, size = 0x12000, scoped, tag = 'internal scratch']
  %s0 = inlined_call_operand.vmem [shape: f32[8,256], index: 0, kind: input, shape index: {}]
  %s1 = inlined_call_operand.vmem [shape: f32[8,256], index: 1, kind: input, shape index: {}]
  %s2 = inlined_call_operand.vmem [shape: f32[8,256], index: 2, kind: input, shape index: {}]
  %s3 = inlined_call_operand.vmem [shape: f32[1,8,1], index: 3, kind: output, shape index: {0}]
  %s4 = inlined_call_operand.vmem [shape: f32[1,8,1], index: 4, kind: output, shape index: {1}]
  %5 = xla_tuple %s3, %s4
  %s6 = sld [smem:[#allocation0]]
  $region34: #{combined_bce_dice_loss.1} parent=0
    _
  %s8 = ssub.s32 1, %s6
  %s9 = scalar_select 0, %s8, %s6
  // Predicated region
  $region2: #{combined_bce_dice_loss.1} parent=0 // pred_check
    _
  $region3: #{combined_bce_dice_loss.1} parent=0 // pred_check_branch
    %11 = sbr.rel (0) target = $region5
  $region4: #{combined_bce_dice_loss.1} parent=0 // pred_region
    %s12 = sadd.s32 0, 0
    %s13 = smul.u32 2, %s12
    %p14 = scmp.lt.s32.totalorder %s13, 1
    %s15 = scalar_select %p14, %s13, 1
    %s16 = smul.addr %s15, 8
    %s17 = scalar_lea.vmem %s0, %s16
    %s18 = sadd.s32 0, 0
    %s19 = smul.u32 2, %s18
  $region5: #{combined_bce_dice_loss.1} parent=0 // pred_fallthru
    _
  // Predicated region
  $region6: #{combined_bce_dice_loss.1} parent=0 // pred_check
    _
  $region7: #{combined_bce_dice_loss.1} parent=0 // pred_check_branch
    %21 = sbr.rel (0) target = $region9
  $region8: #{combined_bce_dice_loss.1} parent=0 // pred_region
    %s22 = sadd.s32 0, 0
    %s23 = smul.u32 2, %s22
    %p24 = scmp.lt.s32.totalorder %s23, 1
    %s25 = scalar_select %p24, %s23, 1
    %s26 = smul.addr %s25, 8
    %s27 = scalar_lea.vmem %s1, %s26
    %s28 = sadd.s32 0, 0
    %s29 = smul.u32 2, %s28
  $region9: #{combined_bce_dice_loss.1} parent=0 // pred_fallthru
    _
  // Predicated region
  $region10: #{combined_bce_dice_loss.1} parent=0 // pred_check
    _
  $region11: #{combined_bce_dice_loss.1} parent=0 // pred_check_branch
    %31 = sbr.rel (0) target = $region13
  $region12: #{combined_bce_dice_loss.1} parent=0 // pred_region
    %s32 = sadd.s32 0, 0
    %s33 = smul.u32 2, %s32
    %p34 = scmp.lt.s32.totalorder %s33, 1
    %s35 = scalar_select %p34, %s33, 1
    %s36 = smul.addr %s35, 8
    %s37 = scalar_lea.vmem %s2, %s36
    %s38 = sadd.s32 0, 0
    %s39 = smul.u32 2, %s38
  $region13: #{combined_bce_dice_loss.1} parent=0 // pred_fallthru
    _
  %s40 = sadd.s32 0, 0
  %s41 = smul.u32 2, %s40
  %p42 = scmp.lt.s32.totalorder %s41, 1
  %s43 = scalar_select %p42, %s41, 1
  %s44 = smul.addr %s43, 8
  %s45 = scalar_lea.vmem %s0, %s44
  %s46 = sadd.s32 0, 0
  %s47 = smul.u32 2, %s46
  %p48 = scmp.lt.s32.totalorder %s47, 1
  %s49 = scalar_select %p48, %s47, 1
  %s50 = smul.addr %s49, 8
  %s51 = scalar_lea.vmem %s1, %s50
  %s52 = sadd.s32 0, 0
  %s53 = smul.u32 2, %s52
  %p54 = scmp.lt.s32.totalorder %s53, 1
  %s55 = scalar_select %p54, %s53, 1
  %s56 = smul.addr %s55, 8
  %s57 = scalar_lea.vmem %s2, %s56
  %s58 = sadd.s32 0, 0
  %s59 = smul.u32 2, %s58
  %p60 = scmp.lt.s32.totalorder %s59, 1
  %s61 = scalar_select %p60, %s59, 1
  %s62 = smul.addr %s61, 8
  %s63 = scalar_lea.vmem %s0, %s62
  %s64 = sadd.s32 0, 0
  %s65 = smul.u32 2, %s64
  %s66 = sadd.s32 0, 0
  %s67 = smul.u32 2, %s66
  %p68 = scmp.lt.s32.totalorder %s67, 1
  %s69 = scalar_select %p68, %s67, 1
  %s70 = smul.addr %s69, 8
  %s71 = scalar_lea.vmem %s1, %s70
  %s72 = sadd.s32 0, 0
  %s73 = smul.u32 2, %s72
  %s74 = sadd.s32 0, 0
  %s75 = smul.u32 2, %s74
  %p76 = scmp.lt.s32.totalorder %s75, 1
  %s77 = scalar_select %p76, %s75, 1
  %s78 = smul.addr %s77, 8
  %s79 = scalar_lea.vmem %s2, %s78
  %s80 = sadd.s32 0, 0
  %s81 = smul.u32 2, %s80
  %p82 = scmp.eq.s32.totalorder 0, 0
  // Predicated region
  $region14: #{combined_bce_dice_loss.1} parent=0 // pred_check
    %p83 = pneg %p82
  $region15: #{combined_bce_dice_loss.1} parent=0 // pred_check_branch
    %85 = sbr.rel (%p83) target = $region17
  $region16: #{combined_bce_dice_loss.1} parent=0 // pred_region
    %vm86 = vcmask 7168
    %87 = vst.msk [vmem:[%s3] sm:$0xff] %vm86, 0.0
    %88 = vst.msk [vmem:[%s4] sm:$0xff] %vm86, 0.0
  $region17: #{combined_bce_dice_loss.1} parent=0 // pred_fallthru
    _
  %v89 = vld [vmem:[%s79] sm:$0xff]
  %v90 = vld [vmem:[%s79 + $0x8] sm:$0xff]
  %v91 = vld [vmem:[%s63] sm:$0xff]
  %v92 = vld [vmem:[%s63 + $0x8] sm:$0xff]
  %v93 = vmul.f32 %v91, %v89
  %v94 = vmul.f32 %v92, %v90
  %v95 = vld [vmem:[%s71] sm:$0xff]
  %v96 = vld [vmem:[%s71 + $0x8] sm:$0xff]
  %v97 = vmul.f32 %v95, %v89
  %v98 = vmul.f32 %v96, %v90
  %v99 = vld [vmem:[%s3] sm:$0xff]
  %v100 = vmul.f32 %v93, %v97
  %v101 = vmul.f32 %v94, %v98
  %v102 = vadd.f32 %v100, %v101
  %103 = vadd.xlane.f32.xlu0 %v102
  %v104 = vpop.xlane.xlu0 %103
  %v105 = vadd.f32 %v99, %v104
  %vm106 = vcmask 7168
  %107 = vst.msk [vmem:[%s3] sm:$0xff] %vm106, %v105
  %v108 = vld [vmem:[%s4] sm:$0xff]
  %v109 = vadd.f32 %v93, %v97
  %v110 = vadd.f32 %v94, %v98
  %v111 = vadd.f32 %v109, %v110
  %112 = vadd.xlane.f32.xlu0 %v111
  %v113 = vpop.xlane.xlu0 %112
  %v114 = vadd.f32 %v108, %v113
  %115 = vst.msk [vmem:[%s4] sm:$0xff] %vm106, %v114
  // Predicated region
  $region18: #{combined_bce_dice_loss.1} parent=0 // pred_check
    _
  $region19: #{combined_bce_dice_loss.1} parent=0 // pred_check_branch
    %117 = sbr.rel (0) target = $region21
  $region20: #{combined_bce_dice_loss.1} parent=0 // pred_region
    _
  $region21: #{combined_bce_dice_loss.1} parent=0 // pred_fallthru
    _
  // Predicated region
  $region22: #{combined_bce_dice_loss.1} parent=0 // pred_check
    _
  $region23: #{combined_bce_dice_loss.1} parent=0 // pred_check_branch
    %119 = sbr.rel (0) target = $region25
  $region24: #{combined_bce_dice_loss.1} parent=0 // pred_region
    _
  $region25: #{combined_bce_dice_loss.1} parent=0 // pred_fallthru
    _
  // Predicated region
  $region26: #{combined_bce_dice_loss.1} parent=0 // pred_check
    _
  $region27: #{combined_bce_dice_loss.1} parent=0 // pred_check_branch
    %121 = sbr.rel (0) target = $region29
  $region28: #{combined_bce_dice_loss.1} parent=0 // pred_region
    _
  $region29: #{combined_bce_dice_loss.1} parent=0 // pred_fallthru
    _
  // Predicated region
  $region30: #{combined_bce_dice_loss.1} parent=0 // pred_check
    _
  $region31: #{combined_bce_dice_loss.1} parent=0 // pred_check_branch
    %123 = sbr.rel (0) target = $region33
  $region32: #{combined_bce_dice_loss.1} parent=0 // pred_region
    _
  $region33: #{combined_bce_dice_loss.1} parent=0 // pred_fallthru
    _

</llo_original>
